<compile_context>
chip_gen: v7x
topology: tpu7x:2x2x1
jax: 0.10.0
libtpu: 0.0.40
codegen_flags: <defaults>
</compile_context>

<pallas_src>
import functools
import math

import jax
import jax.numpy as jnp
from jax import lax
from jax.experimental import pallas as pl
from jax.experimental.pallas import tpu as pltpu


# ----------------------------------------------------------------------------
# Pallas kernel: one (batch, time-tile) grid step
# ----------------------------------------------------------------------------
def _causal_conv1d_kernel(x_ref, w_ref, b_ref, o_ref, win_ref, stk_ref, *,
                          kernel_size, dilation, pad, tile_l, num_l):
    """
    x_ref  : (1, C_in, tile_L)       current time tile (UNPADDED input)
    w_ref  : (C_out, k*C_in)         taps folded into the contraction dim
    b_ref  : (C_out, 1)              bias (zeros when bias=False)
    o_ref  : (1, C_out, tile_L)      lane-dense output tile
    win_ref: (C_in, tile_L + pad)    VMEM scratch: carried left context | current tile
    stk_ref: (k*C_in, tile_L)        VMEM scratch: tap-stacked window
    """
    c_in = x_ref.shape[1]

    if kernel_size == 1:  # pad == 0: degenerate 1x1 conv == plain matmul
        acc = jnp.dot(w_ref[...], x_ref[0], preferred_element_type=jnp.float32)
        o_ref[0] = (acc + b_ref[...]).astype(o_ref.dtype)
        return

    l = pl.program_id(1)

    @pl.when(l == 0)  # causal zero left-context at the start of each sequence
    def _():
        win_ref[:, :pad] = jnp.zeros((c_in, pad), win_ref.dtype)

    # Place the current tile right after the carried left context.
    win_ref[:, pad:pad + tile_l] = x_ref[0]

    # Fold the k taps into the MXU K dim: stk[j*C_in + c, t] = win[c, t + j*dilation].
    for j in range(kernel_size):  # k is small & static -> unrolled, static ref slices
        stk_ref[j * c_in:(j + 1) * c_in, :] = win_ref[:, j * dilation:j * dilation + tile_l]

    # Single MXU matmul, f32 accumulation, f32 bias add, cast on store.
    acc = jnp.dot(w_ref[...], stk_ref[...], preferred_element_type=jnp.float32)
    o_ref[0] = (acc + b_ref[...]).astype(o_ref.dtype)

    if num_l > 1:
        # Carry the last `pad` input columns as the next tile's left context.
        win_ref[:, :pad] = x_ref[0, :, tile_l - pad:]


# ----------------------------------------------------------------------------
# Tile-size selection: largest multiple-of-128 divisor of L that covers the halo
# and fits a conservative per-column VMEM budget (works on v5e/v6e/v7x defaults).
# ----------------------------------------------------------------------------
def _pick_tile_l(length, pad, bytes_per_col, *, max_tile=2048, budget_bytes=8 << 20):
    best = None
    t = 128
    while t <= min(length, max_tile):
        if length % t == 0 and t >= pad and (best is None or t * bytes_per_col <= budget_bytes):
            best = t
        t += 128
    return best if best is not None else length  # fall back to a single full-length tile


# ----------------------------------------------------------------------------
# Wrapper
# ----------------------------------------------------------------------------
def causal_conv1d(x, weight, bias=None, *, stride=1, dilation=1, groups=1, tile_l=None):
    """x: [B, C_in, L]; weight: [C_out, C_in, k] (PyTorch Conv1d layout); bias: [C_out]."""
    assert stride == 1 and groups == 1, "only the module defaults (stride=1, groups=1)"

    B, C_in, L = x.shape
    C_out, C_in_w, kernel_size = weight.shape
    assert C_in_w == C_in
    pad = (kernel_size - 1) * dilation

    itemsize = jnp.dtype(x.dtype).itemsize
    bytes_per_col = itemsize * (2 * C_in + 2 * C_out + (kernel_size + 1) * C_in) + 4 * C_out
    if tile_l is None:
        tile_l = _pick_tile_l(L, pad, bytes_per_col)
    assert L % tile_l == 0, "tile_l must divide L"
    num_l = L // tile_l
    assert tile_l == L or tile_l % 128 == 0, "tile_l must be lane-dense (multiple of 128) or full L"
    assert num_l == 1 or tile_l >= pad, "tile_l must cover the causal receptive-field halo"

    # One-time, tiny data prep in the wrapper (no activation-sized HBM passes):
    #   w2[o, j*C_in + c] = W[o, c, j]
    w2 = jnp.transpose(weight, (0, 2, 1)).reshape(C_out, kernel_size * C_in).astype(x.dtype)
    if bias is None:
        b2 = jnp.zeros((C_out, 1), jnp.float32)
    else:
        b2 = bias.reshape(C_out, 1).astype(jnp.float32)

    kern = functools.partial(
        _causal_conv1d_kernel,
        kernel_size=kernel_size, dilation=dilation, pad=pad, tile_l=tile_l, num_l=num_l)

    # Explicit VMEM budget sized from the actual double-buffered blocks + scratches.
    est = itemsize * (2 * C_in * tile_l                      # x blocks (double-buffered)
                      + 2 * C_out * tile_l                   # out blocks (double-buffered)
                      + 2 * C_out * kernel_size * C_in       # weight blocks
                      + C_in * (tile_l + max(pad, 1))        # window scratch
                      + kernel_size * C_in * tile_l)         # tap-stacked scratch
    est += 4 * (2 * C_out + C_out * tile_l)                  # bias + f32 accumulator temp
    vmem_limit = int(min(64 << 20, max(32 << 20, 2 * est)))

    return pl.pallas_call(
        kern,
        out_shape=jax.ShapeDtypeStruct((B, C_out, L), x.dtype),
        grid=(B, num_l),
        in_specs=[
            pl.BlockSpec((1, C_in, tile_l), lambda b, l: (b, 0, l)),
            pl.BlockSpec((C_out, kernel_size * C_in), lambda b, l: (0, 0)),
            pl.BlockSpec((C_out, 1), lambda b, l: (0, 0)),
        ],
        out_specs=pl.BlockSpec((1, C_out, tile_l), lambda b, l: (b, 0, l)),
        scratch_shapes=[
            pltpu.VMEM((C_in, tile_l + pad), x.dtype),                 # carried window
            pltpu.VMEM((kernel_size * C_in, tile_l), x.dtype),         # tap-stacked window
        ],
        compiler_params=pltpu.CompilerParams(
            dimension_semantics=("parallel", "arbitrary"),
            vmem_limit_bytes=vmem_limit),
    )(x, w2, b2)


# ----------------------------------------------------------------------------
# Pure-JAX reference: literal translation of the PyTorch module
#   self.conv(input)[:, :, :-self.pad]     (guarded for pad == 0, i.e. k == 1)
# ----------------------------------------------------------------------------
def reference_causal_conv1d(x, weight, bias=None, *, stride=1, dilation=1):
    k = weight.shape[-1]
    pad = (k - 1) * dilation
    y = lax.conv_general_dilated(
        x, weight,
        window_strides=(stride,),
        padding=[(pad, pad)],                       # nn.Conv1d pads both sides
        rhs_dilation=(dilation,),
        dimension_numbers=("NCH", "OIH", "NCH"),
        precision=lax.Precision.HIGHEST,
    )
    if bias is not None:
        y = y + bias[None, :, None]
    return y if pad == 0 else y[:, :, :-pad]        # drop the trailing pad columns


# ----------------------------------------------------------------------------
# Demo / self-check
# ----------------------------------------------------------------------------
if __name__ == "__main__":
    master = jax.random.PRNGKey(0)

    def run_case(B, C_in, C_out, L, kernel_size, dilation, tile_l, use_bias, key):
        kx, kw, kb = jax.random.split(key, 3)
        x = jax.random.normal(kx, (B, C_in, L), jnp.float32)
        # PyTorch Conv1d default init: U(-sqrt(k), sqrt(k)), k = 1 / (C_in * kernel_size)
        bound = 1.0 / math.sqrt(C_in * kernel_size)
        weight = jax.random.uniform(kw, (C_out, C_in, kernel_size), jnp.float32, -bound, bound)
        bias = jax.random.uniform(kb, (C_out,), jnp.float32, -bound, bound) if use_bias else None

        out = jax.block_until_ready(
            causal_conv1d(x, weight, bias, dilation=dilation, tile_l=tile_l))
        ref = jax.block_until_ready(
            reference_causal_conv1d(x, weight, bias, dilation=dilation))
        assert out.shape == ref.shape == (B, C_out, L), (out.shape, ref.shape)
        err = jnp.max(jnp.abs(out - ref))
        assert jnp.allclose(out, ref, atol=5e-4, rtol=5e-4), (
            f"mismatch: k={kernel_size} d={dilation} tile_l={tile_l} max_err={err}")

    keys = jax.random.split(master, 5)
    # Small shapes; tile_l=128 cases exercise the carried left-context across time tiles.
    run_case(2, 4, 8, 256, 3, 1, None, True, keys[0])   # auto tile (single tile / batch)
    run_case(2, 4, 8, 256, 3, 1, 128, True, keys[1])    # 2 time tiles, dilation 1
    run_case(2, 4, 8, 256, 3, 2, 128, True, keys[2])    # 2 time tiles, dilation 2
    run_case(1, 8, 16, 512, 5, 3, 128, True, keys[3])   # 4 time tiles, pad = 12
    run_case(2, 4, 8, 256, 3, 1, 128, False, keys[4])   # bias=False path

    print("KERNEL_OK")
</pallas_src>

<mosaic_0001>
module attributes {stable_mosaic.version = 11 : i64} {
  func.func @_causal_conv1d_kernel(%arg0: i32, %arg1: i32, %arg2: memref<1x4x256xf32, #tpu.memory_space<vmem>>, %arg3: memref<8x12xf32, #tpu.memory_space<vmem>>, %arg4: memref<8x1xf32, #tpu.memory_space<vmem>>, %arg5: memref<1x8x256xf32, #tpu.memory_space<vmem>>, %arg6: memref<4x258xf32, #tpu.memory_space<vmem>>, %arg7: memref<12x256xf32, #tpu.memory_space<vmem>>) attributes {dimension_semantics = [#tpu.dimension_semantics<parallel>, #tpu.dimension_semantics<arbitrary>], iteration_bounds = array<i64: 2, 1>, scalar_prefetch = 0 : i64, scratch_operands = 2 : i64, tpu.core_type = #tpu.core_type<tc>, window_params = [{transform_indices = @transform_0, window_bounds = array<i64: 1, 4, 256>}, {pipeline_mode = #tpu.pipeline_mode<synchronous>, transform_indices = @transform_1, window_bounds = array<i64: 8, 12>}, {pipeline_mode = #tpu.pipeline_mode<synchronous>, transform_indices = @transform_2, window_bounds = array<i64: 8, 1>}, {transform_indices = @transform_3, window_bounds = array<i64: 1, 8, 256>}]} {
    %c0_i32 = arith.constant 0 : i32
    %0 = arith.cmpi eq, %arg1, %c0_i32 : i32
    %1 = arith.extui %0 : i1 to i32
    %c0_i32_0 = arith.constant 0 : i32
    %2 = arith.cmpi ne, %1, %c0_i32_0 : i32
    scf.if %2 {
      %cst_22 = arith.constant 0.000000e+00 : f32
      %21 = vector.broadcast %cst_22 : f32 to vector<4x2xf32>
      %c0_23 = arith.constant 0 : index
      %c0_24 = arith.constant 0 : index
      %22 = vector.load %arg6[%c0_23, %c0_24] : memref<4x258xf32, #tpu.memory_space<vmem>>, vector<4x2xf32>
      tpu.vector_store %arg6[%c0_23, %c0_24], %21 {strides = array<i32>} : memref<4x258xf32, #tpu.memory_space<vmem>>, vector<4x2xf32>,
    } else {
    }
    %c0 = arith.constant 0 : index
    %c0_1 = arith.constant 0 : index
    %c0_2 = arith.constant 0 : index
    %3 = vector.load %arg2[%c0, %c0_1, %c0_2] : memref<1x4x256xf32, #tpu.memory_space<vmem>>, vector<1x4x256xf32>
    %4 = vector.shape_cast %3 : vector<1x4x256xf32> to vector<4x256xf32>
    %c0_3 = arith.constant 0 : index
    %c2 = arith.constant 2 : index
    %5 = vector.load %arg6[%c0_3, %c2] : memref<4x258xf32, #tpu.memory_space<vmem>>, vector<4x256xf32>
    tpu.vector_store %arg6[%c0_3, %c2], %4 {strides = array<i32>} : memref<4x258xf32, #tpu.memory_space<vmem>>, vector<4x256xf32>,
    %c0_4 = arith.constant 0 : index
    %c0_5 = arith.constant 0 : index
    %6 = vector.load %arg6[%c0_4, %c0_5] : memref<4x258xf32, #tpu.memory_space<vmem>>, vector<4x256xf32>
    %c0_6 = arith.constant 0 : index
    %c0_7 = arith.constant 0 : index
    %7 = vector.load %arg7[%c0_6, %c0_7] : memref<12x256xf32, #tpu.memory_space<vmem>>, vector<4x256xf32>
    tpu.vector_store %arg7[%c0_6, %c0_7], %6 {strides = array<i32>} : memref<12x256xf32, #tpu.memory_space<vmem>>, vector<4x256xf32>,
    %c0_8 = arith.constant 0 : index
    %c1 = arith.constant 1 : index
    %8 = vector.load %arg6[%c0_8, %c1] : memref<4x258xf32, #tpu.memory_space<vmem>>, vector<4x256xf32>
    %c4 = arith.constant 4 : index
    %c0_9 = arith.constant 0 : index
    %9 = vector.load %arg7[%c4, %c0_9] : memref<12x256xf32, #tpu.memory_space<vmem>>, vector<4x256xf32>
    tpu.vector_store %arg7[%c4, %c0_9], %8 {strides = array<i32>} : memref<12x256xf32, #tpu.memory_space<vmem>>, vector<4x256xf32>,
    %c0_10 = arith.constant 0 : index
    %c2_11 = arith.constant 2 : index
    %10 = vector.load %arg6[%c0_10, %c2_11] : memref<4x258xf32, #tpu.memory_space<vmem>>, vector<4x256xf32>
    %c8 = arith.constant 8 : index
    %c0_12 = arith.constant 0 : index
    %11 = vector.load %arg7[%c8, %c0_12] : memref<12x256xf32, #tpu.memory_space<vmem>>, vector<4x256xf32>
    tpu.vector_store %arg7[%c8, %c0_12], %10 {strides = array<i32>} : memref<12x256xf32, #tpu.memory_space<vmem>>, vector<4x256xf32>,
    %c0_13 = arith.constant 0 : index
    %c0_14 = arith.constant 0 : index
    %12 = vector.load %arg3[%c0_13, %c0_14] : memref<8x12xf32, #tpu.memory_space<vmem>>, vector<8x12xf32>
    %c0_15 = arith.constant 0 : index
    %c0_16 = arith.constant 0 : index
    %13 = vector.load %arg7[%c0_15, %c0_16] : memref<12x256xf32, #tpu.memory_space<vmem>>, vector<12x256xf32>
    %cst = arith.constant dense<0.000000e+00> : vector<8x256xf32>
    %14 = tpu.matmul %12, %13, %cst {dimension_numbers = #tpu.dot_dimension_numbers<[1], [0], [0], [1], [0, 0, 1, 1], [], []>} : vector<8x12xf32>, vector<12x256xf32>, vector<8x256xf32> -> vector<8x256xf32>
    %c0_17 = arith.constant 0 : index
    %c0_18 = arith.constant 0 : index
    %15 = vector.load %arg4[%c0_17, %c0_18] : memref<8x1xf32, #tpu.memory_space<vmem>>, vector<8x1xf32>
    %16 = vector.broadcast %15 : vector<8x1xf32> to vector<8x256xf32>
    %17 = arith.addf %14, %16 : vector<8x256xf32>
    %c0_19 = arith.constant 0 : index
    %c0_20 = arith.constant 0 : index
    %c0_21 = arith.constant 0 : index
    %18 = vector.load %arg5[%c0_19, %c0_20, %c0_21] : memref<1x8x256xf32, #tpu.memory_space<vmem>>, vector<1x8x256xf32>
    %19 = vector.shape_cast %18 : vector<1x8x256xf32> to vector<8x256xf32>
    %20 = vector.shape_cast %17 : vector<8x256xf32> to vector<1x8x256xf32>
    tpu.vector_store %arg5[%c0_19, %c0_20, %c0_21], %20 {strides = array<i32>} : memref<1x8x256xf32, #tpu.memory_space<vmem>>, vector<1x8x256xf32>,
    return
  }
  func.func @transform_0(%arg0: i32, %arg1: i32) -> (i32, i32, i32) {
    %c0_i32 = arith.constant 0 : i32
    %c0_i32_0 = arith.constant 0 : i32
    return %arg0, %c0_i32, %arg1 : i32, i32, i32
  }
  func.func @transform_1(%arg0: i32, %arg1: i32) -> (i32, i32) {
    %c0_i32 = arith.constant 0 : i32
    %c0_i32_0 = arith.constant 0 : i32
    %c0_i32_1 = arith.constant 0 : i32
    return %c0_i32, %c0_i32_0 : i32, i32
  }
  func.func @transform_2(%arg0: i32, %arg1: i32) -> (i32, i32) {
    %c0_i32 = arith.constant 0 : i32
    %c0_i32_0 = arith.constant 0 : i32
    %c0_i32_1 = arith.constant 0 : i32
    return %c0_i32, %c0_i32_0 : i32, i32
  }
  func.func @transform_3(%arg0: i32, %arg1: i32) -> (i32, i32, i32) {
    %c0_i32 = arith.constant 0 : i32
    %c0_i32_0 = arith.constant 0 : i32
    return %arg0, %c0_i32, %arg1 : i32, i32, i32
  }
}

</mosaic_0001>

<llo_original>
// kernel: tpu_custom_call.1
$region0: #{tpu_custom_call.1}
  #allocation0 [shape = 'u32[]', space=smem, size = 0x4, offset = 0x4, fixed_abs, tag = 'smem constant byte address 0x4 - core index']
  #allocation1 [shape = 'u32[144,128]{1,0:T(1,128)}', space=vmem, size = 0x12000, scoped, tag = 'internal scratch']
  #allocation2 [shape = 'f32[4,258]{1,0:T(4,128)}', space=vmem, size = 0x1800, scoped, tag = 'scratch operand']
  #allocation3 [shape = 'f32[12,256]{1,0:T(8,128)}', space=vmem, size = 0x4000, scoped, tag = 'scratch operand']
  %s0 = inlined_call_operand.hbm [shape: f32[2,4,256], index: 0, kind: input, shape index: {}]
  %s1 = inlined_call_operand.vmem [shape: f32[8,12], index: 1, kind: input, shape index: {}]
  %s2 = inlined_call_operand.vmem [shape: f32[8,1], index: 2, kind: input, shape index: {}]
  %s3 = inlined_call_operand.hbm [shape: f32[2,8,256], index: 3, kind: output, shape index: {}]
  %s4 = sld [smem:[#allocation0]]
  $region53: #{tpu_custom_call.1} parent=0
    _
  %s6 = ssub.s32 1, %s4
  %s7 = scalar_select 0, %s6, %s4
  $region1: #{tpu_custom_call.1} parent=0
    #allocation4 [shape = 'u8[8192]{0}', space=vmem, size = 0x2000, scoped, tag = 'input window, operand 0']
    #allocation5 [shape = 's32[2]{0}', space=sflag, size = 0x8, scoped, tag = 'scoped memory for tpu_custom_call.1']
    #allocation6 [shape = 's32[2]{0}', space=sflag, size = 0x8, scoped, tag = 'scoped memory for tpu_custom_call.1']
    #allocation7 [shape = 'u8[16384]{0}', space=vmem, size = 0x4000, scoped, tag = 'output window, operand 0']
    %8 = vsyncpa [#allocation5], 0
    %s9 = scalar_lea.sflag [#allocation5], 1
    %10 = vsyncpa %s9, 0
    %11 = vsyncpa [#allocation6], 0
    %s12 = scalar_lea.sflag [#allocation6], 1
    %13 = vsyncpa %s12, 0
    loop: start=0, step=1, limit=4
    $region2: #{tpu_custom_call.1} parent=1 // loop_pre_header
      _
    $region3: #{tpu_custom_call.1} parent=1 // loop_header
      %s15 = sphi 0, %s19
      %p16 = scmp.ge.s32.totalorder %s15, 4
      %s22 = sphi 0, %s34
      %s23 = sphi 0, %s30
      %s24 = sphi 0, %s22
      %s25 = sphi 0, %s23
      %s26 = sphi 0, %s24
      %s27 = sphi 0, %s25
      %s39 = sphi 0, %s41
      %s42 = sphi 0, %s39
      %s43 = sphi 0, %s42
      %s59 = sphi 0, %s43
      %s63 = sphi 0, %s63
      %s65 = sphi 0, %s63
      %s66 = sphi 0, %s65
      %s80 = sphi 0, %s66
      %s84 = sphi 0, %s84
      %s86 = sphi 0, %s84
      %s87 = sphi 0, %s86
      %s101 = sphi 0, %s87
      %s109 = sphi 0, %s111
      %s112 = sphi 0, %s109
      %s113 = sphi 0, %s112
      %s129 = sphi 0, %s113
    $region4: #{tpu_custom_call.1} parent=1 // loop_header_branch
      %18 = sbr.rel (%p16) target = $region8
    $region5: #{tpu_custom_call.1} parent=1 // loop_body
      %s20 = ssub.s32 %s15, 1
      %s21 = ssub.s32 %s15, 2
      %s28 = sadd.s32 1, %s23
      %p29 = scmp.ge.s32.totalorder %s28, 1
      %s30 = scalar_select %p29, 0, %s28
      %s31 = sadd.s32 1, %s22
      %s32 = scalar_select %p29, %s31, %s22
      %p33 = scmp.ge.s32.totalorder %s32, 2
      %s34 = scalar_select %p33, 0, %s32
      %s35 = ssub.s32 %s22, %s34
      %s36 = ssub.s32 %s23, %s30
      %s37 = sor.u32 %s35, %s36
      %p38 = scmp.eq.s32.totalorder %s37, 0
      %s40 = sadd.s32 %s39, 1
      %s41 = scalar_select %p38, %s39, %s40
      %p44 = pneg %p38
      %p45 = scmp.eq.s32.totalorder %s15, 1
      %p46 = por %p44, %p45
      %p47 = scmp.ne.s32.totalorder %s39, %s42
      %p48 = scmp.eq.s32.totalorder %s15, 0
      %p49 = por %p47, %p48
      %p50 = scmp.ne.s32.totalorder %s39, %s42
      %p51 = scmp.eq.s32.totalorder %s20, 1
      %p52 = por %p50, %p51
      %p53 = scmp.ne.s32.totalorder %s42, %s43
      %p54 = scmp.eq.s32.totalorder %s20, 0
      %p55 = por %p53, %p54
      %p56 = scmp.ne.s32.totalorder %s42, %s43
      %p57 = scmp.eq.s32.totalorder %s21, 1
      %p58 = por %p56, %p57
      %p60 = scmp.ne.s32.totalorder %s43, %s59
      %p61 = scmp.eq.s32.totalorder %s21, 0
      %p62 = por %p60, %p61
      %s64 = sadd.s32 %s63, 1
      %p67 = scmp.eq.s32.totalorder %s15, 1
      %p68 = scmp.ne.s32.totalorder %s63, %s65
      %p69 = scmp.eq.s32.totalorder %s15, 0
      %p70 = por %p68, %p69
      %p71 = scmp.ne.s32.totalorder %s63, %s65
      %p72 = scmp.eq.s32.totalorder %s20, 1
      %p73 = por %p71, %p72
      %p74 = scmp.ne.s32.totalorder %s65, %s66
      %p75 = scmp.eq.s32.totalorder %s20, 0
      %p76 = por %p74, %p75
      %p77 = scmp.ne.s32.totalorder %s65, %s66
      %p78 = scmp.eq.s32.totalorder %s21, 1
      %p79 = por %p77, %p78
      %p81 = scmp.ne.s32.totalorder %s66, %s80
      %p82 = scmp.eq.s32.totalorder %s21, 0
      %p83 = por %p81, %p82
      %s85 = sadd.s32 %s84, 1
      %p88 = scmp.eq.s32.totalorder %s15, 1
      %p89 = scmp.ne.s32.totalorder %s84, %s86
      %p90 = scmp.eq.s32.totalorder %s15, 0
      %p91 = por %p89, %p90
      %p92 = scmp.ne.s32.totalorder %s84, %s86
      %p93 = scmp.eq.s32.totalorder %s20, 1
      %p94 = por %p92, %p93
      %p95 = scmp.ne.s32.totalorder %s86, %s87
      %p96 = scmp.eq.s32.totalorder %s20, 0
      %p97 = por %p95, %p96
      %p98 = scmp.ne.s32.totalorder %s86, %s87
      %p99 = scmp.eq.s32.totalorder %s21, 1
      %p100 = por %p98, %p99
      %p102 = scmp.ne.s32.totalorder %s87, %s101
      %p103 = scmp.eq.s32.totalorder %s21, 0
      %p104 = por %p102, %p103
      %s105 = ssub.s32 %s22, %s34
      %s106 = ssub.s32 %s23, %s30
      %s107 = sor.u32 %s105, %s106
      %p108 = scmp.eq.s32.totalorder %s107, 0
      %s110 = sadd.s32 %s109, 1
      %s111 = scalar_select %p108, %s109, %s110
      %p114 = pneg %p108
      %p115 = scmp.eq.s32.totalorder %s15, 1
      %p116 = por %p114, %p115
      %p117 = scmp.ne.s32.totalorder %s109, %s112
      %p118 = scmp.eq.s32.totalorder %s15, 0
      %p119 = por %p117, %p118
      %p120 = scmp.ne.s32.totalorder %s109, %s112
      %p121 = scmp.eq.s32.totalorder %s20, 1
      %p122 = por %p120, %p121
      %p123 = scmp.ne.s32.totalorder %s112, %s113
      %p124 = scmp.eq.s32.totalorder %s20, 0
      %p125 = por %p123, %p124
      %p126 = scmp.ne.s32.totalorder %s112, %s113
      %p127 = scmp.eq.s32.totalorder %s21, 1
      %p128 = por %p126, %p127
      %p130 = scmp.ne.s32.totalorder %s113, %s129
      %p131 = scmp.eq.s32.totalorder %s21, 0
      %p132 = por %p130, %p131
      %p133 = scmp.le.s32.totalorder 1, %s15
      %p134 = scmp.lt.s32.totalorder %s15, 3
      %p135 = pnand %p133, %p134
      %p136 = pneg %p135
      // Predicated region
      $region9: #{tpu_custom_call.1} parent=5 // pred_check
        _
      $region10: #{tpu_custom_call.1} parent=5 // pred_check_branch
        %138 = sbr.rel (%p135) target = $region12
      $region11: #{tpu_custom_call.1} parent=5 // pred_region
        %s139 = ssub.s32 %s15, 1
        // Predicated region
        $region13: #{tpu_custom_call.1} parent=11 // pred_check
          %p140 = pneg %p76
        $region14: #{tpu_custom_call.1} parent=11 // pred_check_branch
          %142 = sbr.rel (%p140) target = $region16
        $region15: #{tpu_custom_call.1} parent=11 // pred_region
          _
        $region16: #{tpu_custom_call.1} parent=11 // pred_fallthru
          _
        // Predicated region
        $region17: #{tpu_custom_call.1} parent=11 // pred_check
          %p143 = pneg %p97
        $region18: #{tpu_custom_call.1} parent=11 // pred_check_branch
          %145 = sbr.rel (%p143) target = $region20
        $region19: #{tpu_custom_call.1} parent=11 // pred_region
          _
        $region20: #{tpu_custom_call.1} parent=11 // pred_fallthru
          _
      $region12: #{tpu_custom_call.1} parent=5 // pred_fallthru
        _
      %p146 = scmp.lt.s32.totalorder %s15, 2
      // Predicated region
      $region21: #{tpu_custom_call.1} parent=5 // pred_check
        %p147 = pneg %p146
      $region22: #{tpu_custom_call.1} parent=5 // pred_check_branch
        %149 = sbr.rel (%p147) target = $region24
      $region23: #{tpu_custom_call.1} parent=5 // pred_region
        // Predicated region
        $region25: #{tpu_custom_call.1} parent=23 // pred_check
          %p150 = pneg %p49
        $region26: #{tpu_custom_call.1} parent=23 // pred_check_branch
          %152 = sbr.rel (%p150) target = $region28
        $region27: #{tpu_custom_call.1} parent=23 // pred_region
          %s153 = sand.u32 %s39, 1
          %s154 = scalar_lea.sflag [#allocation5], %s153
          %s155 = sand.u32 %s39, 1
          %s156 = smul.addr %s155, 8
          %s157 = scalar_lea.vmem [#allocation4], %s156
          %s158 = smul.u32 2, %s23
          %s160 = ssub.s32 128, 128
          %161 = vsyncadd %s154, %s160
          %s162 = smul.addr %s22, 2
          %s163 = sadd.s32 %s158, %s162
          %s164 = smul.addr %s163, 64
          %s165 = scalar_lea.hbm %s0, %s164
          %s167 = sshll.u32 %s157, 4
          %s168 = int_to_ptr.vmem [resolvable:$true] %s167
          %170 = dma.hbm_to_vmem [thread:$0]  %s165, 128, %s168, %s154
        $region28: #{tpu_custom_call.1} parent=23 // pred_fallthru
          _
      $region24: #{tpu_custom_call.1} parent=5 // pred_fallthru
        _
      %p171 = scmp.le.s32.totalorder 1, %s15
      %p172 = scmp.lt.s32.totalorder %s15, 3
      %p173 = pnand %p171, %p172
      %p174 = pneg %p173
      // Predicated region
      $region29: #{tpu_custom_call.1} parent=5 // pred_check
        _
      $region30: #{tpu_custom_call.1} parent=5 // pred_check_branch
        %176 = sbr.rel (%p173) target = $region32
      $region31: #{tpu_custom_call.1} parent=5 // pred_region
        %s177 = ssub.s32 %s15, 1
        %s178 = sand.u32 %s42, 1
        %s179 = scalar_lea.sflag [#allocation5], %s178
        %s180 = sand.u32 %s42, 1
        %s181 = smul.addr %s180, 8
        %s182 = scalar_lea.vmem [#allocation4], %s181
        // Predicated region
        $region33: #{tpu_custom_call.1} parent=31 // pred_check
          %p183 = pneg %p55
        $region34: #{tpu_custom_call.1} parent=31 // pred_check_branch
          %185 = sbr.rel (%p183) target = $region36
        $region35: #{tpu_custom_call.1} parent=31 // pred_region
          %186 = dma.done %s179, 128
        $region36: #{tpu_custom_call.1} parent=31 // pred_fallthru
          _
        %s187 = sand.u32 %s42, 1
        %s188 = scalar_lea.sflag [#allocation5], %s187
        %s189 = sand.u32 %s42, 1
        %s190 = smul.addr %s189, 8
        %s191 = scalar_lea.vmem [#allocation4], %s190
        %p192 = pneg %p55
        %p193 = pneg %p52
        %p194 = pneg %p76
        %p195 = pneg %p73
        %p196 = pneg %p97
        %p197 = pneg %p94
        %p198 = pneg %p125
        %p199 = pneg %p122
        %s200 = sand.u32 %s112, 1
        %s201 = scalar_lea.sflag [#allocation6], %s200
        %s202 = sand.u32 %s112, 1
        %s203 = smul.addr %s202, 16
        %s204 = scalar_lea.vmem [#allocation7], %s203
        %s205 = smul.u32 2, %s25
        %s206 = smul.u32 2, %s25
        %p207 = scmp.eq.s32.totalorder %s25, 0
        // Predicated region
        $region37: #{tpu_custom_call.1} parent=31 // pred_check
          %p208 = pneg %p207
        $region38: #{tpu_custom_call.1} parent=31 // pred_check_branch
          %210 = sbr.rel (%p208) target = $region40
        $region39: #{tpu_custom_call.1} parent=31 // pred_region
          %vm211 = vcmask 11264
          %212 = vst.msk [vmem:[#allocation2] sm:$0xf] %vm211, 0.0
        $region40: #{tpu_custom_call.1} parent=31 // pred_fallthru
          _
        %v213 = vld [vmem:[%s182] sm:$0xff]
        %215 = vrot.lane.b32.xlu0 %v213, 2
        %v216 = vpop.permute.xlu0 %215
        %v217 = vrot.slane %v216, 4
        %vm218 = vcmask 15360
        %v219 = vsel %vm218, %v217, %v216
        %vm222 = vcmask 1043472
        %vm223 = vcmask 1047556
        %vm224 = vmor %vm223, %vm222
        %225 = vst.msk [vmem:[#allocation2] sm:$0xff] %vm224, %v219
        %vm226 = vcmask 11264
        %227 = vst.msk [vmem:[#allocation2 + $0x8] sm:$0xf] %vm226, %v217
        %v228 = vld [vmem:[#allocation2] sm:$0xff]
        %v230 = vcombine.high %v228, %v228
        %232 = vst [vmem:[#allocation3] sm:$0xf] %v228
        %233 = vst [vmem:[#allocation3 + $0x8] sm:$0xf] %v230
        %v234 = vld [vmem:[#allocation2] sm:$0xff]
        %v235 = vld [vmem:[#allocation2 + $0x8] sm:$0xf]
        %v238 = vcombine.low %v234, %v234
        %v239 = vcombine.low %v235, %v235
        %240 = vrot.lane.b32.xlu0 %v238, 127
        %v241 = vpop.permute.xlu0 %240
        %242 = vrot.lane.b32.xlu0 %v234, 127
        %v243 = vpop.permute.xlu0 %242
        %244 = vrot.lane.b32.xlu0 %v239, 127
        %v245 = vpop.permute.xlu0 %244
        %vm246 = vcmask 1039360
        %v247 = vsel %vm246, %v241, %v243
        %v248 = vsel %vm246, %v243, %v245
        %251 = vst [vmem:[#allocation3] sm:$0xf0] %v247
        %252 = vst [vmem:[#allocation3 + $0x8] sm:$0xf0] %v248
        %v253 = vld [vmem:[#allocation2] sm:$0xff]
        %v254 = vld [vmem:[#allocation2 + $0x8] sm:$0xf]
        %v257 = vcombine.high %v253, %v253
        %258 = vrot.lane.b32.xlu0 %v253, 126
        %v259 = vpop.permute.xlu0 %258
        %260 = vrot.lane.b32.xlu0 %v257, 126
        %v261 = vpop.permute.xlu0 %260
        %262 = vrot.lane.b32.xlu0 %v254, 126
        %v263 = vpop.permute.xlu0 %262
        %vm264 = vcmask 1031168
        %v265 = vsel %vm264, %v259, %v261
        %v266 = vsel %vm264, %v261, %v263
        %269 = vst [vmem:[#allocation3 + $0x10] sm:$0xf] %v265
        %270 = vst [vmem:[#allocation3 + $0x18] sm:$0xf] %v266
        %v271 = vld [vmem:[%s1] sm:$0xff]
        %v272 = vld [vmem:[#allocation3] sm:$0xff]
        %v273 = vld [vmem:[#allocation3 + $0x8] sm:$0xff]
        %v274 = vld [vmem:[#allocation3 + $0x10] sm:$0xf]
        %v275 = vld [vmem:[#allocation3 + $0x18] sm:$0xf]
        %v276 = vld [vmem:[%s2] sm:$0xff]
        %278 = vset.pattern.permute.xlu0 0
        %279 = vperm.xlu0 %278, %v276
        %v280 = vpop.permute.xlu0 %279
        %vm282 = vcmask 97280
        %v284 = vsel %vm282, %v271, 0
        %vm286 = vcmask 1043456
        %v288 = vsel %vm286, %v274, 0
        %v291 = vsel %vm286, %v275, 0
        %293 = vmatprep.subr.mxu0 %v273
        %294 = vmatpush1.msra.mxu0 %v272
        %295 = vmatprep.subr.mxu0 %v291
        %296 = vmatpush1.msra.mxu0 %v288
        %297 = vmatprep.subr.mxu0 0.0
        %298 = vmatpush1.msra.mxu0 0.0
        %299 = vmatprep.subr.mxu0 0.0
        %300 = vmatpush1.msra.mxu0 0.0
        %301 = vmatprep.subr.mxu0 0.0
        %302 = vmatpush1.msra.mxu0 0.0
        %303 = vmatprep.subr.mxu0 0.0
        %304 = vmatpush1.msra.mxu0 0.0
        %305 = vmatprep.subr.mxu0 0.0
        %306 = vmatpush1.msra.mxu0 0.0
        %307 = vmatprep.subr.mxu0 0.0
        %308 = vmatpush1.msra.mxu0 0.0
        %309 = vmatprep.subr.mxu0 0.0
        %310 = vmatpush1.msra.mxu0 0.0
        %311 = vmatprep.subr.mxu0 0.0
        %312 = vmatpush1.msra.mxu0 0.0
        %313 = vmatprep.subr.mxu0 0.0
        %314 = vmatpush1.msra.mxu0 0.0
        %315 = vmatprep.subr.mxu0 0.0
        %316 = vmatpush1.msra.mxu0 0.0
        %317 = vmatprep.subr.mxu0 0.0
        %318 = vmatpush1.msra.mxu0 0.0
        %319 = vmatprep.subr.mxu0 0.0
        %320 = vmatpush1.msra.mxu0 0.0
        %321 = vmatprep.subr.mxu0 0.0
        %322 = vmatpush1.msra.mxu0 0.0
        %323 = vmatprep.subr.mxu0 0.0
        %324 = vmatpush1.msra.mxu0 0.0
        %325 = vmatprep.subr.mxu0 0.0
        %326 = vmatpush1.msra.mxu0 0.0
        %327 = vmatprep.subr.mxu0 0.0
        %328 = vmatpush1.msra.mxu0 0.0
        %329 = vmatprep.subr.mxu0 0.0
        %330 = vmatpush1.msra.mxu0 0.0
        %331 = vmatprep.subr.mxu0 0.0
        %332 = vmatpush1.msra.mxu0 0.0
        %333 = vmatprep.subr.mxu0 0.0
        %334 = vmatpush1.msra.mxu0 0.0
        %335 = vmatprep.subr.mxu0 0.0
        %336 = vmatpush1.msra.mxu0 0.0
        %337 = vmatprep.subr.mxu0 0.0
        %338 = vmatpush1.msra.mxu0 0.0
        %339 = vmatprep.subr.mxu0 0.0
        %340 = vmatpush1.msra.mxu0 0.0
        %341 = vmatprep.subr.mxu0 0.0
        %342 = vmatpush1.msra.mxu0 0.0
        %343 = vmatprep.subr.mxu0 0.0
        %344 = vmatpush1.msra.mxu0 0.0
        %345 = vmatprep.subr.mxu0 0.0
        %346 = vmatpush1.msra.mxu0 0.0
        %347 = vmatprep.subr.mxu0 0.0
        %348 = vmatpush1.msra.mxu0 0.0
        %349 = vmatprep.subr.mxu0 0.0
        %350 = vmatpush1.msra.mxu0 0.0
        %351 = vmatprep.subr.mxu0 0.0
        %352 = vmatpush1.msra.mxu0 0.0
        %353 = vmatprep.subr.mxu0 0.0
        %354 = vmatpush1.msra.mxu0 0.0
        %355 = vmatprep.subr.mxu0 0.0
        %356 = vmatpush1.msra.mxu0 0.0
        %357 = vmatprep.mubr.f32.mxu0 0.0
        %358 = vmatmul.mubr.f32.gmra.mrb[0].mxu0 %v284
        %v359 = vpop.f32.mrb[0].mxu0
        %v360 = vadd.f32 %v280, %v359
        %v361 = vpop.f32.mrb[0].mxu0
        %v362 = vadd.f32 %v280, %v361
        %363 = vdwg.mxu0
        %364 = vst [vmem:[%s204] sm:$0xff] %v360
        %365 = vst [vmem:[%s204 + $0x8] sm:$0xff] %v362
        %s366 = sand.u32 %s112, 1
        %s367 = scalar_lea.sflag [#allocation6], %s366
        %s368 = sand.u32 %s112, 1
        %s369 = smul.addr %s368, 16
        %s370 = scalar_lea.vmem [#allocation7], %s369
        // Predicated region
        $region41: #{tpu_custom_call.1} parent=31 // pred_check
          %p371 = pneg %p122
        $region42: #{tpu_custom_call.1} parent=31 // pred_check_branch
          %373 = sbr.rel (%p371) target = $region44
        $region43: #{tpu_custom_call.1} parent=31 // pred_region
          %s374 = smul.u32 2, %s25
          %s376 = ssub.s32 256, 256
          %377 = vsyncadd %s367, %s376
          %s378 = smul.addr %s24, 2
          %s379 = sadd.s32 %s374, %s378
          %s380 = smul.addr %s379, 128
          %s381 = scalar_lea.hbm %s3, %s380
          %s383 = sshll.u32 %s370, 4
          %s384 = int_to_ptr.vmem [resolvable:$true] %s383
          %386 = dma.vmem_to_hbm [thread:$0]  %s384, 256, %s381, %s367
        $region44: #{tpu_custom_call.1} parent=31 // pred_fallthru
          _
      $region32: #{tpu_custom_call.1} parent=5 // pred_fallthru
        _
      %p387 = scmp.le.s32.totalorder 2, %s15
      // Predicated region
      $region45: #{tpu_custom_call.1} parent=5 // pred_check
        %p388 = pneg %p387
      $region46: #{tpu_custom_call.1} parent=5 // pred_check_branch
        %390 = sbr.rel (%p388) target = $region48
      $region47: #{tpu_custom_call.1} parent=5 // pred_region
        %s391 = ssub.s32 %s15, 2
        // Predicated region
        $region49: #{tpu_custom_call.1} parent=47 // pred_check
          %p392 = pneg %p128
        $region50: #{tpu_custom_call.1} parent=47 // pred_check_branch
          %394 = sbr.rel (%p392) target = $region52
        $region51: #{tpu_custom_call.1} parent=47 // pred_region
          %s395 = sand.u32 %s113, 1
          %s396 = scalar_lea.sflag [#allocation6], %s395
          %s397 = sand.u32 %s113, 1
          %s398 = smul.addr %s397, 16
          %s399 = scalar_lea.vmem [#allocation7], %s398
          %400 = dma.done %s396, 256
        $region52: #{tpu_custom_call.1} parent=47 // pred_fallthru
          _
      $region48: #{tpu_custom_call.1} parent=5 // pred_fallthru
        _
    $region6: #{tpu_custom_call.1} parent=1 // loop_footer
      %s19 = sadd.s32 1, %s15
    $region7: #{tpu_custom_call.1} parent=1 // loop_footer_branch
      %14 = sbr.rel target = $region3
    $region8: #{tpu_custom_call.1} parent=1 // loop_exit
      _
    %401 = vsyncpa [#allocation5], 1
    %s402 = scalar_lea.sflag [#allocation5], 1
    %403 = vsyncpa %s402, 1
    %404 = vsyncpa [#allocation6], 1
    %s405 = scalar_lea.sflag [#allocation6], 1
    %406 = vsyncpa %s405, 1

</llo_original>
